<compile_context>
chip_gen: v5e
topology: v5e:2x2
jax: 0.10.0
libtpu: 0.0.40
codegen_flags: <defaults>
</compile_context>

<pallas_src>
import jax
import jax.numpy as jnp
from jax.experimental import pallas as pl
from jax.experimental.pallas import tpu as pltpu


# ----------------------------------------------------------------------------
# Helpers
# ----------------------------------------------------------------------------
def _round_up(v, m):
    return ((v + m - 1) // m) * m


def _pad_to(arr, shape):
    pads = [(0, t - s) for s, t in zip(arr.shape, shape)]
    if all(p == (0, 0) for p in pads):
        return arr
    return jnp.pad(arr, pads)


def _vmem_capacity_bytes():
    try:
        return int(pltpu.get_tpu_info().vmem_capacity_bytes)
    except Exception:
        return 64 << 20  # conservative fallback (v7x per-core VMEM)


# ----------------------------------------------------------------------------
# Kernel
# ----------------------------------------------------------------------------
def semantic_bbox_head_kernel(
    x_ref,                 # (TN, TK)       ROI-feature tile (compute dtype), streamed
    w1_ref, b1_ref,        # fc1:  (TK, F) cd (streamed over k), (1, F) f32
    w2_ref, b2_ref,        # fc2:  (F, F) cd,                    (1, F) f32
    wh_ref, bh_ref,        # combined head [wsem@ks | wreg]: (F, Kp+Rp) cd, (1, Kp+Rp) f32
    out_ref,               # out:  (TN, Kp+Rp) f32  (score | bbox slab)
    acc_ref,               # scratch: (TN, F) f32 fc1 accumulator
):
    k = pl.program_id(1)

    @pl.when(k == 0)
    def _():
        acc_ref[...] = jnp.zeros_like(acc_ref)

    # fc1 partial contraction over this Cflat slice (MXU, f32 accumulation).
    acc_ref[...] += jnp.dot(
        x_ref[...], w1_ref[...], preferred_element_type=jnp.float32
    )

    @pl.when(k == pl.num_programs(1) - 1)
    def _():
        cd = w2_ref.dtype
        # shared fc1 bias + relu, shared fc2, then one wide head matmul.
        h = jnp.maximum(acc_ref[...] + b1_ref[...], 0.0)
        h = jnp.dot(h.astype(cd), w2_ref[...], preferred_element_type=jnp.float32)
        h = jnp.maximum(h + b2_ref[...], 0.0)
        out_ref[...] = (
            jnp.dot(h.astype(cd), wh_ref[...], preferred_element_type=jnp.float32)
            + bh_ref[...]
        )


# ----------------------------------------------------------------------------
# Wrapper
# ----------------------------------------------------------------------------
def semantic_bbox_head_forward(
    x_nchw,
    bg_vector,
    params,
    *,
    tile_n=None,
    tile_k=None,
    compute_dtype=jnp.bfloat16,
):
    """Fused forward (eval mode). Returns (semantic_score, bbox_pred, losses={})."""
    f32 = jnp.float32
    cd = jnp.dtype(compute_dtype)
    cdb = cd.itemsize

    N = x_nchw.shape[0]
    x2d = x_nchw.reshape(N, -1).astype(cd)       # cast BEFORE padding (no f32 copy)
    cflat = x2d.shape[1]
    fdim = params["w1"].shape[1]
    K = params["vec"].shape[1]
    R = params["wreg"].shape[1]                  # 4 * num_classes

    # --- hoisted input-independent subgraph (f32): sync_bg + tanh(kernel_semantic(vec))
    vec = params["vec"].astype(f32).at[:, 0].set(bg_vector.astype(f32))
    ks = jnp.tanh(vec @ params["wks"].astype(f32) + params["bks"].astype(f32))  # (D, K)
    # algebraic fold: (h @ wsem + bsem) @ ks == h @ (wsem @ ks) + (bsem @ ks)
    wsem_ks = params["wsem"].astype(f32) @ ks    # (F, K)
    bsem_ks = params["bsem"].astype(f32) @ ks    # (1, K)

    # --- lane-dense output padding + concat into one wide head matrix ---
    LANE = 128
    Kp = _round_up(K, LANE)
    Rp = _round_up(R, LANE)
    out_w = Kp + Rp
    wcomb = jnp.concatenate(
        [_pad_to(wsem_ks, (fdim, Kp)),
         _pad_to(params["wreg"].astype(f32), (fdim, Rp))], axis=1)      # (F, Kp+Rp)
    bcomb = jnp.concatenate(
        [_pad_to(bsem_ks, (1, Kp)),
         _pad_to(params["breg"].astype(f32), (1, Rp))], axis=1)         # (1, Kp+Rp)

    # --- Cflat contraction tiling (stream w1 when it is too big to sit resident) ---
    if tile_k is None:
        tile_k = cflat if cflat * fdim * cdb <= (8 << 20) else 1024
    if tile_k != cflat:
        tile_k = _round_up(min(tile_k, cflat), LANE)
    cflat_p = _round_up(cflat, tile_k)
    num_k = cflat_p // tile_k

    # --- ROI tiling (fill the 256-wide MXU; bf16 packs (16,128) per vreg) ---
    sub = 16 if cdb == 2 else 8
    cap = int(0.8 * _vmem_capacity_bytes())      # per-generation cap with headroom
    if tile_n is None:
        tile_n = 256 if N >= 256 else _round_up(max(N, sub), sub)
    tile_n = max(sub, _round_up(tile_n, sub))

    def vmem_needed(tn):
        x_buf = 2 * tn * tile_k * cdb                                   # streamed x
        w1_buf = (2 if num_k > 1 else 1) * tile_k * fdim * cdb          # streamed/resident
        res = (fdim * fdim + fdim * out_w) * cdb + (2 * fdim + out_w) * 4
        out_buf = 2 * tn * out_w * 4
        acc = tn * fdim * 4
        return x_buf + w1_buf + res + out_buf + acc + (2 << 20)

    while vmem_needed(tile_n) > cap and tile_n > sub:
        tile_n = max(sub, _round_up(tile_n // 2, sub))

    Np = _round_up(N, tile_n)
    x_p = _pad_to(x2d, (Np, cflat_p))
    w1_p = _pad_to(params["w1"].astype(cd), (cflat_p, fdim))
    grid = (Np // tile_n, num_k)

    inputs = (
        x_p,
        w1_p, params["b1"].astype(f32),
        params["w2"].astype(cd), params["b2"].astype(f32),
        wcomb.astype(cd), bcomb,
    )

    def resident(arr):
        nd = arr.ndim
        # constant index map + single buffer: stays in VMEM, no duplicate allocation.
        return pl.BlockSpec(
            arr.shape, lambda i, k: (0,) * nd, pipeline_mode=pl.Buffered(1)
        )

    x_spec = pl.BlockSpec((tile_n, tile_k), lambda i, k: (i, k))
    if num_k > 1:
        # streamed over the contraction axis -> keep default double buffering.
        w1_spec = pl.BlockSpec((tile_k, fdim), lambda i, k: (k, 0))
    else:
        w1_spec = pl.BlockSpec(
            (tile_k, fdim), lambda i, k: (k, 0), pipeline_mode=pl.Buffered(1)
        )

    in_specs = [x_spec, w1_spec] + [resident(a) for a in inputs[2:]]
    out_shape = jax.ShapeDtypeStruct((Np, out_w), f32)
    out_specs = pl.BlockSpec((tile_n, out_w), lambda i, k: (i, 0))

    def nbytes(a):
        return int(a.size) * a.dtype.itemsize

    flops = 2 * Np * (cflat_p * fdim + fdim * fdim + fdim * out_w)
    bytes_accessed = sum(nbytes(a) for a in inputs) + Np * out_w * 4
    cost = pl.CostEstimate(
        flops=int(flops), transcendentals=0, bytes_accessed=int(bytes_accessed)
    )

    out_p = pl.pallas_call(
        semantic_bbox_head_kernel,
        out_shape=out_shape,
        grid=grid,
        in_specs=in_specs,
        out_specs=out_specs,
        scratch_shapes=[pltpu.VMEM((tile_n, fdim), jnp.float32)],
        compiler_params=pltpu.CompilerParams(
            dimension_semantics=("parallel", "arbitrary"),  # ROI tiles || , contraction last
            vmem_limit_bytes=int(min(cap, max(vmem_needed(tile_n), 16 << 20))),
        ),
        cost_estimate=cost,
    )(*inputs)

    score = out_p[:N, :K]
    bbox = out_p[:N, Kp:Kp + R]
    losses = {}  # eval mode: PyTorch module returns an empty losses dict
    return score, bbox, losses


# ----------------------------------------------------------------------------
# Synthetic params + pure-JAX reference
# ----------------------------------------------------------------------------
def make_params(key, cflat, fc_out, semantic_dims, num_classes):
    """Deterministic synthetic parameters (Linear weights pre-transposed to (in, out))."""
    keys = jax.random.split(key, 12)

    def nrm(k, shape, scale=0.05):
        return (scale * jax.random.normal(k, shape)).astype(jnp.float32)

    K = num_classes
    return {
        "w1": nrm(keys[0], (cflat, fc_out)),
        "b1": nrm(keys[1], (1, fc_out)),
        "w2": nrm(keys[2], (fc_out, fc_out)),
        "b2": nrm(keys[3], (1, fc_out)),
        "wsem": nrm(keys[4], (fc_out, semantic_dims)),
        "bsem": nrm(keys[5], (1, semantic_dims)),
        "vec": nrm(keys[6], (semantic_dims, K), scale=1.0),   # word vectors (D, K)
        "wks": nrm(keys[7], (K, K), scale=0.5),
        "bks": nrm(keys[8], (1, K)),
        "wreg": nrm(keys[9], (fc_out, 4 * K)),
        "breg": nrm(keys[10], (1, 4 * K)),
    }


def reference_forward(x_nchw, bg_vector, p):
    """Pure-JAX f32 reference mirroring the PyTorch forward (eval mode)."""
    N = x_nchw.shape[0]
    x = x_nchw.reshape(N, -1)
    h = jax.nn.relu(x @ p["w1"] + p["b1"])
    h = jax.nn.relu(h @ p["w2"] + p["b2"])
    sem_feat = h @ p["wsem"] + p["bsem"]
    vec = p["vec"].at[:, 0].set(bg_vector)
    ks = jnp.tanh(vec @ p["wks"] + p["bks"])
    score = sem_feat @ ks
    bbox = h @ p["wreg"] + p["breg"]
    return score, bbox


# ----------------------------------------------------------------------------
# Demo / correctness check (small shapes)
# ----------------------------------------------------------------------------
if __name__ == "__main__":
    # ROI features (N, C, H, W) -> flatten -> 2 shared FCs -> semantic/bbox heads.
    N, C, H, W = 32, 16, 4, 4          # Cflat = 256
    FC_OUT = 128
    SEM_DIMS = 64
    NUM_CLASSES = 4

    key = jax.random.PRNGKey(0)
    kx, kbg, kp = jax.random.split(key, 3)

    x = jax.random.normal(kx, (N, C, H, W), dtype=jnp.float32)
    bg_vector = jax.random.normal(kbg, (SEM_DIMS,), dtype=jnp.float32)
    params = make_params(kp, C * H * W, FC_OUT, SEM_DIMS, NUM_CLASSES)

    ref_score, ref_bbox = reference_forward(x, bg_vector, params)

    # 1) f32 compute path, single k step: tight check against the pure-JAX reference.
    score32, bbox32, losses = semantic_bbox_head_forward(
        x, bg_vector, params, tile_n=16, compute_dtype=jnp.float32
    )
    score32, bbox32 = jax.block_until_ready((score32, bbox32))
    assert score32.shape == (N, NUM_CLASSES)
    assert bbox32.shape == (N, 4 * NUM_CLASSES)
    assert jnp.allclose(score32, ref_score, atol=2e-3, rtol=2e-3)
    assert jnp.allclose(bbox32, ref_bbox, atol=2e-3, rtol=2e-3)
    assert losses == {}

    # 2) f32, streamed Cflat contraction (tile_k=128 -> 2 k steps): exercises the
    #    accumulator / @pl.when epilogue path used for production-size w1.
    score_k, bbox_k, _ = semantic_bbox_head_forward(
        x, bg_vector, params, tile_n=16, tile_k=128, compute_dtype=jnp.float32
    )
    score_k, bbox_k = jax.block_until_ready((score_k, bbox_k))
    assert jnp.allclose(score_k, ref_score, atol=2e-3, rtol=2e-3)
    assert jnp.allclose(bbox_k, ref_bbox, atol=2e-3, rtol=2e-3)

    # 3) bf16 fast path (MXU-native operands, f32 accumulation): looser tolerance.
    score16, bbox16, _ = semantic_bbox_head_forward(
        x, bg_vector, params, compute_dtype=jnp.bfloat16
    )
    score16, bbox16 = jax.block_until_ready((score16, bbox16))
    assert score16.shape == (N, NUM_CLASSES)
    assert bbox16.shape == (N, 4 * NUM_CLASSES)
    assert jnp.allclose(score16, ref_score, atol=7e-2, rtol=7e-2)
    assert jnp.allclose(bbox16, ref_bbox, atol=7e-2, rtol=7e-2)

    print("KERNEL_OK")
</pallas_src>

<mosaic_0001>
module attributes {stable_mosaic.version = 11 : i64} {
  func.func @semantic_bbox_head_kernel(%arg0: i32, %arg1: i32, %arg2: memref<16x256xf32, #tpu.memory_space<vmem>>, %arg3: memref<256x128xf32, #tpu.memory_space<vmem>>, %arg4: memref<1x128xf32, #tpu.memory_space<vmem>>, %arg5: memref<128x128xf32, #tpu.memory_space<vmem>>, %arg6: memref<1x128xf32, #tpu.memory_space<vmem>>, %arg7: memref<128x256xf32, #tpu.memory_space<vmem>>, %arg8: memref<1x256xf32, #tpu.memory_space<vmem>>, %arg9: memref<16x256xf32, #tpu.memory_space<vmem>>, %arg10: memref<16x128xf32, #tpu.memory_space<vmem>>) attributes {dimension_semantics = [#tpu.dimension_semantics<parallel>, #tpu.dimension_semantics<arbitrary>], iteration_bounds = array<i64: 2, 1>, scalar_prefetch = 0 : i64, scratch_operands = 1 : i64, tpu.core_type = #tpu.core_type<tc>, window_params = [{transform_indices = @transform_0, window_bounds = array<i64: 16, 256>}, {pipeline_mode = #tpu.pipeline_mode<synchronous>, transform_indices = @transform_1, window_bounds = array<i64: 256, 128>}, {pipeline_mode = #tpu.pipeline_mode<synchronous>, transform_indices = @transform_2, window_bounds = array<i64: 1, 128>}, {pipeline_mode = #tpu.pipeline_mode<synchronous>, transform_indices = @transform_3, window_bounds = array<i64: 128, 128>}, {pipeline_mode = #tpu.pipeline_mode<synchronous>, transform_indices = @transform_4, window_bounds = array<i64: 1, 128>}, {pipeline_mode = #tpu.pipeline_mode<synchronous>, transform_indices = @transform_5, window_bounds = array<i64: 128, 256>}, {pipeline_mode = #tpu.pipeline_mode<synchronous>, transform_indices = @transform_6, window_bounds = array<i64: 1, 256>}, {transform_indices = @transform_7, window_bounds = array<i64: 16, 256>}]} {
    %c0_i32 = arith.constant 0 : i32
    %0 = arith.cmpi eq, %arg1, %c0_i32 : i32
    %1 = arith.extui %0 : i1 to i32
    %c0_i32_0 = arith.constant 0 : i32
    %2 = arith.cmpi ne, %1, %c0_i32_0 : i32
    scf.if %2 {
      %cst_10 = arith.constant 0.000000e+00 : f32
      %12 = vector.broadcast %cst_10 : f32 to vector<16x128xf32>
      %c0_11 = arith.constant 0 : index
      %c0_12 = arith.constant 0 : index
      %13 = vector.load %arg10[%c0_11, %c0_12] : memref<16x128xf32, #tpu.memory_space<vmem>>, vector<16x128xf32>
      tpu.vector_store %arg10[%c0_11, %c0_12], %12 {strides = array<i32>} : memref<16x128xf32, #tpu.memory_space<vmem>>, vector<16x128xf32>,
    } else {
    }
    %c0 = arith.constant 0 : index
    %c0_1 = arith.constant 0 : index
    %3 = vector.load %arg10[%c0, %c0_1] : memref<16x128xf32, #tpu.memory_space<vmem>>, vector<16x128xf32>
    %c0_2 = arith.constant 0 : index
    %c0_3 = arith.constant 0 : index
    %4 = vector.load %arg2[%c0_2, %c0_3] : memref<16x256xf32, #tpu.memory_space<vmem>>, vector<16x256xf32>
    %c0_4 = arith.constant 0 : index
    %c0_5 = arith.constant 0 : index
    %5 = vector.load %arg3[%c0_4, %c0_5] : memref<256x128xf32, #tpu.memory_space<vmem>>, vector<256x128xf32>
    %cst = arith.constant dense<0.000000e+00> : vector<16x128xf32>
    %6 = tpu.matmul %4, %5, %cst {dimension_numbers = #tpu.dot_dimension_numbers<[1], [0], [0], [1], [0, 0, 1, 1], [], []>} : vector<16x256xf32>, vector<256x128xf32>, vector<16x128xf32> -> vector<16x128xf32>
    %7 = arith.addf %3, %6 : vector<16x128xf32>
    %c0_6 = arith.constant 0 : index
    %c0_7 = arith.constant 0 : index
    %8 = vector.load %arg10[%c0_6, %c0_7] : memref<16x128xf32, #tpu.memory_space<vmem>>, vector<16x128xf32>
    tpu.vector_store %arg10[%c0_6, %c0_7], %7 {strides = array<i32>} : memref<16x128xf32, #tpu.memory_space<vmem>>, vector<16x128xf32>,
    %c0_i32_8 = arith.constant 0 : i32
    %9 = arith.cmpi eq, %arg1, %c0_i32_8 : i32
    %10 = arith.extui %9 : i1 to i32
    %c0_i32_9 = arith.constant 0 : i32
    %11 = arith.cmpi ne, %10, %c0_i32_9 : i32
    scf.if %11 {
      %c0_10 = arith.constant 0 : index
      %c0_11 = arith.constant 0 : index
      %12 = vector.load %arg10[%c0_10, %c0_11] : memref<16x128xf32, #tpu.memory_space<vmem>>, vector<16x128xf32>
      %c0_12 = arith.constant 0 : index
      %c0_13 = arith.constant 0 : index
      %13 = vector.load %arg4[%c0_12, %c0_13] : memref<1x128xf32, #tpu.memory_space<vmem>>, vector<1x128xf32>
      %14 = vector.broadcast %13 : vector<1x128xf32> to vector<16x128xf32>
      %15 = arith.addf %12, %14 : vector<16x128xf32>
      %cst_14 = arith.constant 0.000000e+00 : f32
      %16 = vector.broadcast %cst_14 : f32 to vector<16x128xf32>
      %17 = arith.maximumf %15, %16 : vector<16x128xf32>
      %c0_15 = arith.constant 0 : index
      %c0_16 = arith.constant 0 : index
      %18 = vector.load %arg5[%c0_15, %c0_16] : memref<128x128xf32, #tpu.memory_space<vmem>>, vector<128x128xf32>
      %cst_17 = arith.constant dense<0.000000e+00> : vector<16x128xf32>
      %19 = tpu.matmul %17, %18, %cst_17 {dimension_numbers = #tpu.dot_dimension_numbers<[1], [0], [0], [1], [0, 0, 1, 1], [], []>} : vector<16x128xf32>, vector<128x128xf32>, vector<16x128xf32> -> vector<16x128xf32>
      %c0_18 = arith.constant 0 : index
      %c0_19 = arith.constant 0 : index
      %20 = vector.load %arg6[%c0_18, %c0_19] : memref<1x128xf32, #tpu.memory_space<vmem>>, vector<1x128xf32>
      %21 = vector.broadcast %20 : vector<1x128xf32> to vector<16x128xf32>
      %22 = arith.addf %19, %21 : vector<16x128xf32>
      %cst_20 = arith.constant 0.000000e+00 : f32
      %23 = vector.broadcast %cst_20 : f32 to vector<16x128xf32>
      %24 = arith.maximumf %22, %23 : vector<16x128xf32>
      %c0_21 = arith.constant 0 : index
      %c0_22 = arith.constant 0 : index
      %25 = vector.load %arg7[%c0_21, %c0_22] : memref<128x256xf32, #tpu.memory_space<vmem>>, vector<128x256xf32>
      %cst_23 = arith.constant dense<0.000000e+00> : vector<16x256xf32>
      %26 = tpu.matmul %24, %25, %cst_23 {dimension_numbers = #tpu.dot_dimension_numbers<[1], [0], [0], [1], [0, 0, 1, 1], [], []>} : vector<16x128xf32>, vector<128x256xf32>, vector<16x256xf32> -> vector<16x256xf32>
      %c0_24 = arith.constant 0 : index
      %c0_25 = arith.constant 0 : index
      %27 = vector.load %arg8[%c0_24, %c0_25] : memref<1x256xf32, #tpu.memory_space<vmem>>, vector<1x256xf32>
      %28 = vector.broadcast %27 : vector<1x256xf32> to vector<16x256xf32>
      %29 = arith.addf %26, %28 : vector<16x256xf32>
      %c0_26 = arith.constant 0 : index
      %c0_27 = arith.constant 0 : index
      %30 = vector.load %arg9[%c0_26, %c0_27] : memref<16x256xf32, #tpu.memory_space<vmem>>, vector<16x256xf32>
      tpu.vector_store %arg9[%c0_26, %c0_27], %29 {strides = array<i32>} : memref<16x256xf32, #tpu.memory_space<vmem>>, vector<16x256xf32>,
    } else {
    }
    return
  }
  func.func @transform_0(%arg0: i32, %arg1: i32) -> (i32, i32) {
    %c0_i32 = arith.constant 0 : i32
    return %arg0, %arg1 : i32, i32
  }
  func.func @transform_1(%arg0: i32, %arg1: i32) -> (i32, i32) {
    %c0_i32 = arith.constant 0 : i32
    %c0_i32_0 = arith.constant 0 : i32
    return %arg1, %c0_i32 : i32, i32
  }
  func.func @transform_2(%arg0: i32, %arg1: i32) -> (i32, i32) {
    %c0_i32 = arith.constant 0 : i32
    %c0_i32_0 = arith.constant 0 : i32
    %c0_i32_1 = arith.constant 0 : i32
    return %c0_i32, %c0_i32_0 : i32, i32
  }
  func.func @transform_3(%arg0: i32, %arg1: i32) -> (i32, i32) {
    %c0_i32 = arith.constant 0 : i32
    %c0_i32_0 = arith.constant 0 : i32
    %c0_i32_1 = arith.constant 0 : i32
    return %c0_i32, %c0_i32_0 : i32, i32
  }
  func.func @transform_4(%arg0: i32, %arg1: i32) -> (i32, i32) {
    %c0_i32 = arith.constant 0 : i32
    %c0_i32_0 = arith.constant 0 : i32
    %c0_i32_1 = arith.constant 0 : i32
    return %c0_i32, %c0_i32_0 : i32, i32
  }
  func.func @transform_5(%arg0: i32, %arg1: i32) -> (i32, i32) {
    %c0_i32 = arith.constant 0 : i32
    %c0_i32_0 = arith.constant 0 : i32
    %c0_i32_1 = arith.constant 0 : i32
    return %c0_i32, %c0_i32_0 : i32, i32
  }
  func.func @transform_6(%arg0: i32, %arg1: i32) -> (i32, i32) {
    %c0_i32 = arith.constant 0 : i32
    %c0_i32_0 = arith.constant 0 : i32
    %c0_i32_1 = arith.constant 0 : i32
    return %c0_i32, %c0_i32_0 : i32, i32
  }
  func.func @transform_7(%arg0: i32, %arg1: i32) -> (i32, i32) {
    %c0_i32 = arith.constant 0 : i32
    %c0_i32_0 = arith.constant 0 : i32
    return %arg0, %c0_i32 : i32, i32
  }
}

</mosaic_0001>

<llo_original>
// kernel: tpu_custom_call.1
$region0: #{tpu_custom_call.1}
  #allocation0 [shape = 'u32[]', space=smem, size = 0x4, offset = 0x4, fixed_abs, tag = 'smem constant byte address 0x4 - core index']
  #allocation1 [shape = 'u32[72,128]{1,0:T(1,128)}', space=vmem, size = 0x9000, scoped, tag = 'internal scratch']
  #allocation2 [shape = 'f32[16,128]{1,0:T(8,128)}', space=vmem, size = 0x2000, scoped, tag = 'scratch operand']
  %s0 = inlined_call_operand.hbm [shape: f32[32,256], index: 0, kind: input, shape index: {}]
  %s1 = inlined_call_operand.hbm [shape: f32[256,128], index: 1, kind: input, shape index: {}]
  %s2 = inlined_call_operand.vmem [shape: f32[1,128], index: 2, kind: input, shape index: {}]
  %s3 = inlined_call_operand.hbm [shape: f32[128,128], index: 3, kind: input, shape index: {}]
  %s4 = inlined_call_operand.hbm [shape: f32[1,128], index: 4, kind: input, shape index: {}]
  %s5 = inlined_call_operand.hbm [shape: f32[128,256], index: 5, kind: input, shape index: {}]
  %s6 = inlined_call_operand.vmem [shape: f32[1,256], index: 6, kind: input, shape index: {}]
  %s7 = inlined_call_operand.hbm [shape: f32[32,256], index: 7, kind: output, shape index: {}]
  %s8 = sld [smem:[#allocation0]]
  $region89: #{tpu_custom_call.1} parent=0
    _
  %s10 = ssub.s32 1, %s8
  %s11 = scalar_select 0, %s10, %s8
  $region1: #{tpu_custom_call.1} parent=0
    #allocation3 [shape = 'u8[32768]{0}', space=vmem, size = 0x8000, scoped, tag = 'input window, operand 0']
    #allocation4 [shape = 's32[2]{0}', space=sflag, size = 0x8, scoped, tag = 'scoped memory for tpu_custom_call.1']
    #allocation5 [shape = 's32[2]{0}', space=sflag, size = 0x8, scoped, tag = 'scoped memory for tpu_custom_call.1']
    #allocation6 [shape = 'u8[131072]{0}', space=vmem, size = 0x20000, scoped, tag = 'input window, operand 1, single buffered']
    #allocation7 [shape = 's32[1]{0}', space=sflag, size = 0x4, scoped, tag = 'scoped memory for tpu_custom_call.1']
    #allocation8 [shape = 'u8[65536]{0}', space=vmem, size = 0x10000, scoped, tag = 'input window, operand 3, single buffered']
    #allocation9 [shape = 'u8[512]{0}', space=vmem, size = 0x400, scoped, tag = 'input window, operand 4, single buffered']
    #allocation10 [shape = 's32[1]{0}', space=sflag, size = 0x4, scoped, tag = 'scoped memory for tpu_custom_call.1']
    #allocation11 [shape = 'u8[131072]{0}', space=vmem, size = 0x20000, scoped, tag = 'input window, operand 5, single buffered']
    #allocation12 [shape = 'u8[32768]{0}', space=vmem, size = 0x8000, scoped, tag = 'output window, operand 0']
    %12 = vsyncpa [#allocation4], 0
    %s13 = scalar_lea.sflag [#allocation4], 1
    %14 = vsyncpa %s13, 0
    %15 = vsyncpa [#allocation7], 0
    %16 = vsyncpa [#allocation10], 0
    %17 = vsyncpa [#allocation5], 0
    %s18 = scalar_lea.sflag [#allocation5], 1
    %19 = vsyncpa %s18, 0
    loop: start=0, step=1, limit=4
    $region2: #{tpu_custom_call.1} parent=1 // loop_pre_header
      _
    $region3: #{tpu_custom_call.1} parent=1 // loop_header
      %s21 = sphi 0, %s25
      %p22 = scmp.ge.s32.totalorder %s21, 4
      %s28 = sphi 0, %s40
      %s29 = sphi 0, %s36
      %s30 = sphi 0, %s28
      %s31 = sphi 0, %s29
      %s32 = sphi 0, %s30
      %s33 = sphi 0, %s31
      %s45 = sphi 0, %s47
      %s48 = sphi 0, %s45
      %s49 = sphi 0, %s48
      %s65 = sphi 0, %s49
      %s71 = sphi 0, %s73
      %s74 = sphi 0, %s71
      %s75 = sphi 0, %s74
      %s91 = sphi 0, %s75
      %s95 = sphi 0, %s95
      %s97 = sphi 0, %s95
      %s98 = sphi 0, %s97
      %s112 = sphi 0, %s98
      %s116 = sphi 0, %s116
      %s118 = sphi 0, %s116
      %s119 = sphi 0, %s118
      %s133 = sphi 0, %s119
      %s137 = sphi 0, %s137
      %s139 = sphi 0, %s137
      %s140 = sphi 0, %s139
      %s154 = sphi 0, %s140
      %s158 = sphi 0, %s158
      %s160 = sphi 0, %s158
      %s161 = sphi 0, %s160
      %s175 = sphi 0, %s161
      %s179 = sphi 0, %s179
      %s181 = sphi 0, %s179
      %s182 = sphi 0, %s181
      %s196 = sphi 0, %s182
      %s202 = sphi 0, %s204
      %s205 = sphi 0, %s202
      %s206 = sphi 0, %s205
      %s222 = sphi 0, %s206
    $region4: #{tpu_custom_call.1} parent=1 // loop_header_branch
      %24 = sbr.rel (%p22) target = $region8
    $region5: #{tpu_custom_call.1} parent=1 // loop_body
      %s26 = ssub.s32 %s21, 1
      %s27 = ssub.s32 %s21, 2
      %s34 = sadd.s32 1, %s29
      %p35 = scmp.ge.s32.totalorder %s34, 1
      %s36 = scalar_select %p35, 0, %s34
      %s37 = sadd.s32 1, %s28
      %s38 = scalar_select %p35, %s37, %s28
      %p39 = scmp.ge.s32.totalorder %s38, 2
      %s40 = scalar_select %p39, 0, %s38
      %s41 = ssub.s32 %s28, %s40
      %s42 = ssub.s32 %s29, %s36
      %s43 = sor.u32 %s41, %s42
      %p44 = scmp.eq.s32.totalorder %s43, 0
      %s46 = sadd.s32 %s45, 1
      %s47 = scalar_select %p44, %s45, %s46
      %p50 = pneg %p44
      %p51 = scmp.eq.s32.totalorder %s21, 1
      %p52 = por %p50, %p51
      %p53 = scmp.ne.s32.totalorder %s45, %s48
      %p54 = scmp.eq.s32.totalorder %s21, 0
      %p55 = por %p53, %p54
      %p56 = scmp.ne.s32.totalorder %s45, %s48
      %p57 = scmp.eq.s32.totalorder %s26, 1
      %p58 = por %p56, %p57
      %p59 = scmp.ne.s32.totalorder %s48, %s49
      %p60 = scmp.eq.s32.totalorder %s26, 0
      %p61 = por %p59, %p60
      %p62 = scmp.ne.s32.totalorder %s48, %s49
      %p63 = scmp.eq.s32.totalorder %s27, 1
      %p64 = por %p62, %p63
      %p66 = scmp.ne.s32.totalorder %s49, %s65
      %p67 = scmp.eq.s32.totalorder %s27, 0
      %p68 = por %p66, %p67
      %s69 = ssub.s32 %s29, %s36
      %p70 = scmp.eq.s32.totalorder %s69, 0
      %s72 = sadd.s32 %s71, 1
      %s73 = scalar_select %p70, %s71, %s72
      %p76 = pneg %p70
      %p77 = scmp.eq.s32.totalorder %s21, 1
      %p78 = por %p76, %p77
      %p79 = scmp.ne.s32.totalorder %s71, %s74
      %p80 = scmp.eq.s32.totalorder %s21, 0
      %p81 = por %p79, %p80
      %p82 = scmp.ne.s32.totalorder %s71, %s74
      %p83 = scmp.eq.s32.totalorder %s26, 1
      %p84 = por %p82, %p83
      %p85 = scmp.ne.s32.totalorder %s74, %s75
      %p86 = scmp.eq.s32.totalorder %s26, 0
      %p87 = por %p85, %p86
      %p88 = scmp.ne.s32.totalorder %s74, %s75
      %p89 = scmp.eq.s32.totalorder %s27, 1
      %p90 = por %p88, %p89
      %p92 = scmp.ne.s32.totalorder %s75, %s91
      %p93 = scmp.eq.s32.totalorder %s27, 0
      %p94 = por %p92, %p93
      %s96 = sadd.s32 %s95, 1
      %p99 = scmp.eq.s32.totalorder %s21, 1
      %p100 = scmp.ne.s32.totalorder %s95, %s97
      %p101 = scmp.eq.s32.totalorder %s21, 0
      %p102 = por %p100, %p101
      %p103 = scmp.ne.s32.totalorder %s95, %s97
      %p104 = scmp.eq.s32.totalorder %s26, 1
      %p105 = por %p103, %p104
      %p106 = scmp.ne.s32.totalorder %s97, %s98
      %p107 = scmp.eq.s32.totalorder %s26, 0
      %p108 = por %p106, %p107
      %p109 = scmp.ne.s32.totalorder %s97, %s98
      %p110 = scmp.eq.s32.totalorder %s27, 1
      %p111 = por %p109, %p110
      %p113 = scmp.ne.s32.totalorder %s98, %s112
      %p114 = scmp.eq.s32.totalorder %s27, 0
      %p115 = por %p113, %p114
      %s117 = sadd.s32 %s116, 1
      %p120 = scmp.eq.s32.totalorder %s21, 1
      %p121 = scmp.ne.s32.totalorder %s116, %s118
      %p122 = scmp.eq.s32.totalorder %s21, 0
      %p123 = por %p121, %p122
      %p124 = scmp.ne.s32.totalorder %s116, %s118
      %p125 = scmp.eq.s32.totalorder %s26, 1
      %p126 = por %p124, %p125
      %p127 = scmp.ne.s32.totalorder %s118, %s119
      %p128 = scmp.eq.s32.totalorder %s26, 0
      %p129 = por %p127, %p128
      %p130 = scmp.ne.s32.totalorder %s118, %s119
      %p131 = scmp.eq.s32.totalorder %s27, 1
      %p132 = por %p130, %p131
      %p134 = scmp.ne.s32.totalorder %s119, %s133
      %p135 = scmp.eq.s32.totalorder %s27, 0
      %p136 = por %p134, %p135
      %s138 = sadd.s32 %s137, 1
      %p141 = scmp.eq.s32.totalorder %s21, 1
      %p142 = scmp.ne.s32.totalorder %s137, %s139
      %p143 = scmp.eq.s32.totalorder %s21, 0
      %p144 = por %p142, %p143
      %p145 = scmp.ne.s32.totalorder %s137, %s139
      %p146 = scmp.eq.s32.totalorder %s26, 1
      %p147 = por %p145, %p146
      %p148 = scmp.ne.s32.totalorder %s139, %s140
      %p149 = scmp.eq.s32.totalorder %s26, 0
      %p150 = por %p148, %p149
      %p151 = scmp.ne.s32.totalorder %s139, %s140
      %p152 = scmp.eq.s32.totalorder %s27, 1
      %p153 = por %p151, %p152
      %p155 = scmp.ne.s32.totalorder %s140, %s154
      %p156 = scmp.eq.s32.totalorder %s27, 0
      %p157 = por %p155, %p156
      %s159 = sadd.s32 %s158, 1
      %p162 = scmp.eq.s32.totalorder %s21, 1
      %p163 = scmp.ne.s32.totalorder %s158, %s160
      %p164 = scmp.eq.s32.totalorder %s21, 0
      %p165 = por %p163, %p164
      %p166 = scmp.ne.s32.totalorder %s158, %s160
      %p167 = scmp.eq.s32.totalorder %s26, 1
      %p168 = por %p166, %p167
      %p169 = scmp.ne.s32.totalorder %s160, %s161
      %p170 = scmp.eq.s32.totalorder %s26, 0
      %p171 = por %p169, %p170
      %p172 = scmp.ne.s32.totalorder %s160, %s161
      %p173 = scmp.eq.s32.totalorder %s27, 1
      %p174 = por %p172, %p173
      %p176 = scmp.ne.s32.totalorder %s161, %s175
      %p177 = scmp.eq.s32.totalorder %s27, 0
      %p178 = por %p176, %p177
      %s180 = sadd.s32 %s179, 1
      %p183 = scmp.eq.s32.totalorder %s21, 1
      %p184 = scmp.ne.s32.totalorder %s179, %s181
      %p185 = scmp.eq.s32.totalorder %s21, 0
      %p186 = por %p184, %p185
      %p187 = scmp.ne.s32.totalorder %s179, %s181
      %p188 = scmp.eq.s32.totalorder %s26, 1
      %p189 = por %p187, %p188
      %p190 = scmp.ne.s32.totalorder %s181, %s182
      %p191 = scmp.eq.s32.totalorder %s26, 0
      %p192 = por %p190, %p191
      %p193 = scmp.ne.s32.totalorder %s181, %s182
      %p194 = scmp.eq.s32.totalorder %s27, 1
      %p195 = por %p193, %p194
      %p197 = scmp.ne.s32.totalorder %s182, %s196
      %p198 = scmp.eq.s32.totalorder %s27, 0
      %p199 = por %p197, %p198
      %s200 = ssub.s32 %s28, %s40
      %p201 = scmp.eq.s32.totalorder %s200, 0
      %s203 = sadd.s32 %s202, 1
      %s204 = scalar_select %p201, %s202, %s203
      %p207 = pneg %p201
      %p208 = scmp.eq.s32.totalorder %s21, 1
      %p209 = por %p207, %p208
      %p210 = scmp.ne.s32.totalorder %s202, %s205
      %p211 = scmp.eq.s32.totalorder %s21, 0
      %p212 = por %p210, %p211
      %p213 = scmp.ne.s32.totalorder %s202, %s205
      %p214 = scmp.eq.s32.totalorder %s26, 1
      %p215 = por %p213, %p214
      %p216 = scmp.ne.s32.totalorder %s205, %s206
      %p217 = scmp.eq.s32.totalorder %s26, 0
      %p218 = por %p216, %p217
      %p219 = scmp.ne.s32.totalorder %s205, %s206
      %p220 = scmp.eq.s32.totalorder %s27, 1
      %p221 = por %p219, %p220
      %p223 = scmp.ne.s32.totalorder %s206, %s222
      %p224 = scmp.eq.s32.totalorder %s27, 0
      %p225 = por %p223, %p224
      %p226 = scmp.le.s32.totalorder 1, %s21
      %p227 = scmp.lt.s32.totalorder %s21, 3
      %p228 = pnand %p226, %p227
      %p229 = pneg %p228
      // Predicated region
      $region9: #{tpu_custom_call.1} parent=5 // pred_check
        _
      $region10: #{tpu_custom_call.1} parent=5 // pred_check_branch
        %231 = sbr.rel (%p228) target = $region12
      $region11: #{tpu_custom_call.1} parent=5 // pred_region
        %s232 = ssub.s32 %s21, 1
        // Predicated region
        $region13: #{tpu_custom_call.1} parent=11 // pred_check
          %p233 = pneg %p87
        $region14: #{tpu_custom_call.1} parent=11 // pred_check_branch
          %235 = sbr.rel (%p233) target = $region16
        $region15: #{tpu_custom_call.1} parent=11 // pred_region
          %s236 = smul.u32 32, %s31
          %238 = vsyncadd [#allocation7], 0
          %s239 = smul.addr %s236, 8
          %s240 = scalar_lea.hbm %s1, %s239
          %s241 = sshll.u32 %s240, 4
          %s242 = int_to_ptr.hbm [resolvable:$true] %s241
          %s243 = sshll.u32 [#allocation6], 4
          %s244 = int_to_ptr.vmem [resolvable:$true] %s243
          %249 = dma.hbm_to_vmem [thread:$0]  %s242, 4096, %s244, [#allocation7], 128, 128, 8
        $region16: #{tpu_custom_call.1} parent=11 // pred_fallthru
          _
        // Predicated region
        $region17: #{tpu_custom_call.1} parent=11 // pred_check
          %p250 = pneg %p108
        $region18: #{tpu_custom_call.1} parent=11 // pred_check_branch
          %252 = sbr.rel (%p250) target = $region20
        $region19: #{tpu_custom_call.1} parent=11 // pred_region
          _
        $region20: #{tpu_custom_call.1} parent=11 // pred_fallthru
          _
        // Predicated region
        $region21: #{tpu_custom_call.1} parent=11 // pred_check
          %p253 = pneg %p129
        $region22: #{tpu_custom_call.1} parent=11 // pred_check_branch
          %255 = sbr.rel (%p253) target = $region24
        $region23: #{tpu_custom_call.1} parent=11 // pred_region
          %257 = vsyncadd [#allocation7], 0
          %s258 = sshll.u32 %s3, 4
          %s259 = int_to_ptr.hbm [resolvable:$true] %s258
          %s260 = sshll.u32 [#allocation8], 4
          %s261 = int_to_ptr.vmem [resolvable:$true] %s260
          %266 = dma.hbm_to_vmem [thread:$0]  %s259, 2048, %s261, [#allocation7], 128, 128, 8
        $region24: #{tpu_custom_call.1} parent=11 // pred_fallthru
          _
        // Predicated region
        $region25: #{tpu_custom_call.1} parent=11 // pred_check
          %p267 = pneg %p150
        $region26: #{tpu_custom_call.1} parent=11 // pred_check_branch
          %269 = sbr.rel (%p267) target = $region28
        $region27: #{tpu_custom_call.1} parent=11 // pred_region
          %271 = vsyncadd [#allocation10], 0
          %s273 = sshll.u32 %s4, 4
          %s274 = int_to_ptr.hbm [resolvable:$true] %s273
          %s275 = sshll.u32 [#allocation9], 4
          %s276 = int_to_ptr.vmem [resolvable:$true] %s275
          %278 = dma.hbm_to_vmem [thread:$0]  %s274, 16, %s276, [#allocation10]
        $region28: #{tpu_custom_call.1} parent=11 // pred_fallthru
          _
        // Predicated region
        $region29: #{tpu_custom_call.1} parent=11 // pred_check
          %p279 = pneg %p171
        $region30: #{tpu_custom_call.1} parent=11 // pred_check_branch
          %281 = sbr.rel (%p279) target = $region32
        $region31: #{tpu_custom_call.1} parent=11 // pred_region
          %283 = vsyncadd [#allocation10], 0
          %s284 = sshll.u32 %s5, 4
          %s285 = int_to_ptr.hbm [resolvable:$true] %s284
          %s286 = sshll.u32 [#allocation11], 4
          %s287 = int_to_ptr.vmem [resolvable:$true] %s286
          %292 = dma.hbm_to_vmem [thread:$0]  %s285, 4096, %s287, [#allocation10], 256, 256, 16
        $region32: #{tpu_custom_call.1} parent=11 // pred_fallthru
          _
        // Predicated region
        $region33: #{tpu_custom_call.1} parent=11 // pred_check
          %p293 = pneg %p192
        $region34: #{tpu_custom_call.1} parent=11 // pred_check_branch
          %295 = sbr.rel (%p293) target = $region36
        $region35: #{tpu_custom_call.1} parent=11 // pred_region
          _
        $region36: #{tpu_custom_call.1} parent=11 // pred_fallthru
          _
      $region12: #{tpu_custom_call.1} parent=5 // pred_fallthru
        _
      %p296 = scmp.lt.s32.totalorder %s21, 2
      // Predicated region
      $region37: #{tpu_custom_call.1} parent=5 // pred_check
        %p297 = pneg %p296
      $region38: #{tpu_custom_call.1} parent=5 // pred_check_branch
        %299 = sbr.rel (%p297) target = $region40
      $region39: #{tpu_custom_call.1} parent=5 // pred_region
        // Predicated region
        $region41: #{tpu_custom_call.1} parent=39 // pred_check
          %p300 = pneg %p55
        $region42: #{tpu_custom_call.1} parent=39 // pred_check_branch
          %302 = sbr.rel (%p300) target = $region44
        $region43: #{tpu_custom_call.1} parent=39 // pred_region
          %s303 = sand.u32 %s45, 1
          %s304 = scalar_lea.sflag [#allocation4], %s303
          %s305 = sand.u32 %s45, 1
          %s306 = smul.addr %s305, 32
          %s307 = scalar_lea.vmem [#allocation3], %s306
          %s308 = smul.u32 2, %s28
          %s309 = smul.u32 2, %s29
          %311 = vsyncadd %s304, 0
          %s312 = smul.addr %s308, 2
          %s313 = sadd.s32 %s309, %s312
          %s314 = smul.addr %s313, 8
          %s315 = scalar_lea.hbm %s0, %s314
          %s316 = sshll.u32 %s315, 4
          %s317 = int_to_ptr.hbm [resolvable:$true] %s316
          %s318 = sshll.u32 %s307, 4
          %s319 = int_to_ptr.vmem [resolvable:$true] %s318
          %324 = dma.hbm_to_vmem [thread:$0]  %s317, 512, %s319, %s304, 256, 256, 16
        $region44: #{tpu_custom_call.1} parent=39 // pred_fallthru
          _
      $region40: #{tpu_custom_call.1} parent=5 // pred_fallthru
        _
      %p325 = scmp.le.s32.totalorder 1, %s21
      %p326 = scmp.lt.s32.totalorder %s21, 3
      %p327 = pnand %p325, %p326
      %p328 = pneg %p327
      // Predicated region
      $region45: #{tpu_custom_call.1} parent=5 // pred_check
        _
      $region46: #{tpu_custom_call.1} parent=5 // pred_check_branch
        %330 = sbr.rel (%p327) target = $region48
      $region47: #{tpu_custom_call.1} parent=5 // pred_region
        %s331 = ssub.s32 %s21, 1
        %s332 = sand.u32 %s48, 1
        %s333 = scalar_lea.sflag [#allocation4], %s332
        %s334 = sand.u32 %s48, 1
        %s335 = smul.addr %s334, 32
        %s336 = scalar_lea.vmem [#allocation3], %s335
        // Predicated region
        $region49: #{tpu_custom_call.1} parent=47 // pred_check
          %p337 = pneg %p61
        $region50: #{tpu_custom_call.1} parent=47 // pred_check_branch
          %339 = sbr.rel (%p337) target = $region52
        $region51: #{tpu_custom_call.1} parent=47 // pred_region
          %341 = dma.done %s333, 512
        $region52: #{tpu_custom_call.1} parent=47 // pred_fallthru
          _
        // Predicated region
        $region53: #{tpu_custom_call.1} parent=47 // pred_check
          %p342 = pneg %p87
        $region54: #{tpu_custom_call.1} parent=47 // pred_check_branch
          %344 = sbr.rel (%p342) target = $region56
        $region55: #{tpu_custom_call.1} parent=47 // pred_region
          %346 = dma.done [#allocation7], 4096
        $region56: #{tpu_custom_call.1} parent=47 // pred_fallthru
          _
        // Predicated region
        $region57: #{tpu_custom_call.1} parent=47 // pred_check
          %p347 = pneg %p129
        $region58: #{tpu_custom_call.1} parent=47 // pred_check_branch
          %349 = sbr.rel (%p347) target = $region60
        $region59: #{tpu_custom_call.1} parent=47 // pred_region
          %351 = dma.done [#allocation7], 2048
        $region60: #{tpu_custom_call.1} parent=47 // pred_fallthru
          _
        // Predicated region
        $region61: #{tpu_custom_call.1} parent=47 // pred_check
          %p352 = pneg %p150
        $region62: #{tpu_custom_call.1} parent=47 // pred_check_branch
          %354 = sbr.rel (%p352) target = $region64
        $region63: #{tpu_custom_call.1} parent=47 // pred_region
          %356 = dma.done [#allocation10], 16
        $region64: #{tpu_custom_call.1} parent=47 // pred_fallthru
          _
        // Predicated region
        $region65: #{tpu_custom_call.1} parent=47 // pred_check
          %p357 = pneg %p171
        $region66: #{tpu_custom_call.1} parent=47 // pred_check_branch
          %359 = sbr.rel (%p357) target = $region68
        $region67: #{tpu_custom_call.1} parent=47 // pred_region
          %361 = dma.done [#allocation10], 4096
        $region68: #{tpu_custom_call.1} parent=47 // pred_fallthru
          _
        %s362 = sand.u32 %s48, 1
        %s363 = scalar_lea.sflag [#allocation4], %s362
        %s364 = sand.u32 %s48, 1
        %s365 = smul.addr %s364, 32
        %s366 = scalar_lea.vmem [#allocation3], %s365
        %p367 = pneg %p61
        %p368 = pneg %p58
        %p369 = pneg %p87
        %p370 = pneg %p84
        %p371 = pneg %p108
        %p372 = pneg %p105
        %p373 = pneg %p129
        %p374 = pneg %p126
        %p375 = pneg %p150
        %p376 = pneg %p147
        %p377 = pneg %p171
        %p378 = pneg %p168
        %p379 = pneg %p192
        %p380 = pneg %p189
        %p381 = pneg %p218
        %p382 = pneg %p215
        %s383 = sand.u32 %s205, 1
        %s384 = scalar_lea.sflag [#allocation5], %s383
        %s385 = sand.u32 %s205, 1
        %s386 = smul.addr %s385, 32
        %s387 = scalar_lea.vmem [#allocation12], %s386
        %s388 = smul.u32 2, %s30
        %s389 = smul.u32 2, %s31
        %s390 = smul.u32 32, %s31
        %s391 = smul.u32 2, %s30
        %p392 = scmp.eq.s32.totalorder %s31, 0
        // Predicated region
        $region69: #{tpu_custom_call.1} parent=47 // pred_check
          %p393 = pneg %p392
        $region70: #{tpu_custom_call.1} parent=47 // pred_check_branch
          %395 = sbr.rel (%p393) target = $region72
        $region71: #{tpu_custom_call.1} parent=47 // pred_region
          %396 = vst [vmem:[#allocation2] sm:$0xff] 0.0
          %397 = vst [vmem:[#allocation2 + $0x8] sm:$0xff] 0.0
        $region72: #{tpu_custom_call.1} parent=47 // pred_fallthru
          _
        %v398 = vld [vmem:[#allocation2] sm:$0xff]
        %v399 = vld [vmem:[#allocation2 + $0x8] sm:$0xff]
        %v400 = vld [vmem:[%s336] sm:$0xff]
        %v401 = vld [vmem:[%s336 + $0x8] sm:$0xff]
        %v402 = vld [vmem:[%s336 + $0x10] sm:$0xff]
        %v403 = vld [vmem:[%s336 + $0x18] sm:$0xff]
        %v404 = vld [vmem:[#allocation6] sm:$0xff]
        %v405 = vld [vmem:[#allocation6 + $0x8] sm:$0xff]
        %v406 = vld [vmem:[#allocation6 + $0x10] sm:$0xff]
        %v407 = vld [vmem:[#allocation6 + $0x18] sm:$0xff]
        %v408 = vld [vmem:[#allocation6 + $0x20] sm:$0xff]
        %v409 = vld [vmem:[#allocation6 + $0x28] sm:$0xff]
        %v410 = vld [vmem:[#allocation6 + $0x30] sm:$0xff]
        %v411 = vld [vmem:[#allocation6 + $0x38] sm:$0xff]
        %v412 = vld [vmem:[#allocation6 + $0x40] sm:$0xff]
        %v413 = vld [vmem:[#allocation6 + $0x48] sm:$0xff]
        %v414 = vld [vmem:[#allocation6 + $0x50] sm:$0xff]
        %v415 = vld [vmem:[#allocation6 + $0x58] sm:$0xff]
        %v416 = vld [vmem:[#allocation6 + $0x60] sm:$0xff]
        %v417 = vld [vmem:[#allocation6 + $0x68] sm:$0xff]
        %v418 = vld [vmem:[#allocation6 + $0x70] sm:$0xff]
        %v419 = vld [vmem:[#allocation6 + $0x78] sm:$0xff]
        %v420 = vld [vmem:[#allocation6 + $0x80] sm:$0xff]
        %v421 = vld [vmem:[#allocation6 + $0x88] sm:$0xff]
        %v422 = vld [vmem:[#allocation6 + $0x90] sm:$0xff]
        %v423 = vld [vmem:[#allocation6 + $0x98] sm:$0xff]
        %v424 = vld [vmem:[#allocation6 + $0xa0] sm:$0xff]
        %v425 = vld [vmem:[#allocation6 + $0xa8] sm:$0xff]
        %v426 = vld [vmem:[#allocation6 + $0xb0] sm:$0xff]
        %v427 = vld [vmem:[#allocation6 + $0xb8] sm:$0xff]
        %v428 = vld [vmem:[#allocation6 + $0xc0] sm:$0xff]
        %v429 = vld [vmem:[#allocation6 + $0xc8] sm:$0xff]
        %v430 = vld [vmem:[#allocation6 + $0xd0] sm:$0xff]
        %v431 = vld [vmem:[#allocation6 + $0xd8] sm:$0xff]
        %v432 = vld [vmem:[#allocation6 + $0xe0] sm:$0xff]
        %v433 = vld [vmem:[#allocation6 + $0xe8] sm:$0xff]
        %v434 = vld [vmem:[#allocation6 + $0xf0] sm:$0xff]
        %v435 = vld [vmem:[#allocation6 + $0xf8] sm:$0xff]
        %436 = vmatpush.msra.mxu0 %v419
        %437 = vmatpush.msra.mxu0 %v418
        %438 = vmatpush.msra.mxu0 %v417
        %439 = vmatpush.msra.mxu0 %v416
        %440 = vmatpush.msra.mxu0 %v415
        %441 = vmatpush.msra.mxu0 %v414
        %442 = vmatpush.msra.mxu0 %v413
        %443 = vmatpush.msra.mxu0 %v412
        %444 = vmatpush.msra.mxu0 %v411
        %445 = vmatpush.msra.mxu0 %v410
        %446 = vmatpush.msra.mxu0 %v409
        %447 = vmatpush.msra.mxu0 %v408
        %448 = vmatpush.msra.mxu0 %v407
        %449 = vmatpush.msra.mxu0 %v406
        %450 = vmatpush.msra.mxu0 %v405
        %451 = vmatpush.msra.mxu0 %v404
        %452 = vmatmul.f32.gmra.mxu0 %v400
        %v453 = vpop.f32.mrf.mxu0
        %v454 = vadd.f32 0.0, %v453
        %455 = vmatmul.f32.gmra.mxu0 %v402
        %v456 = vpop.f32.mrf.mxu0
        %v457 = vadd.f32 0.0, %v456
        %458 = vdwg.mxu0
        %459 = vmatpush.msra.mxu0 %v435
        %460 = vmatpush.msra.mxu0 %v434
        %461 = vmatpush.msra.mxu0 %v433
        %462 = vmatpush.msra.mxu0 %v432
        %463 = vmatpush.msra.mxu0 %v431
        %464 = vmatpush.msra.mxu0 %v430
        %465 = vmatpush.msra.mxu0 %v429
        %466 = vmatpush.msra.mxu0 %v428
        %467 = vmatpush.msra.mxu0 %v427
        %468 = vmatpush.msra.mxu0 %v426
        %469 = vmatpush.msra.mxu0 %v425
        %470 = vmatpush.msra.mxu0 %v424
        %471 = vmatpush.msra.mxu0 %v423
        %472 = vmatpush.msra.mxu0 %v422
        %473 = vmatpush.msra.mxu0 %v421
        %474 = vmatpush.msra.mxu0 %v420
        %475 = vmatmul.f32.gmra.mxu0 %v401
        %v476 = vpop.f32.mrf.mxu0
        %v477 = vadd.f32 %v454, %v476
        %478 = vmatmul.f32.gmra.mxu0 %v403
        %v479 = vpop.f32.mrf.mxu0
        %v480 = vadd.f32 %v457, %v479
        %481 = vdwg.mxu0
        %v482 = vadd.f32 %v398, %v477
        %v483 = vadd.f32 %v399, %v480
        %484 = vst [vmem:[#allocation2] sm:$0xff] %v482
        %485 = vst [vmem:[#allocation2 + $0x8] sm:$0xff] %v483
        // Predicated region
        $region73: #{tpu_custom_call.1} parent=47 // pred_check
          %p486 = pneg %p392
        $region74: #{tpu_custom_call.1} parent=47 // pred_check_branch
          %488 = sbr.rel (%p486) target = $region76
        $region75: #{tpu_custom_call.1} parent=47 // pred_region
          %v489 = vld [vmem:[#allocation2] sm:$0xff]
          %v490 = vld [vmem:[#allocation2 + $0x8] sm:$0xff]
          %v491 = vld [vmem:[%s2] sm:$0x1]
          %v493 = vperm.slane %v491, 0
          %v495 = vadd.f32 %v489, %v493
          %v496 = vadd.f32 %v490, %v493
          %v497 = vmax.f32 %v495, 0.0
          %v498 = vmax.f32 %v496, 0.0
          %v499 = vld [vmem:[#allocation8] sm:$0xff]
          %v500 = vld [vmem:[#allocation8 + $0x8] sm:$0xff]
          %v501 = vld [vmem:[#allocation8 + $0x10] sm:$0xff]
          %v502 = vld [vmem:[#allocation8 + $0x18] sm:$0xff]
          %v503 = vld [vmem:[#allocation8 + $0x20] sm:$0xff]
          %v504 = vld [vmem:[#allocation8 + $0x28] sm:$0xff]
          %v505 = vld [vmem:[#allocation8 + $0x30] sm:$0xff]
          %v506 = vld [vmem:[#allocation8 + $0x38] sm:$0xff]
          %v507 = vld [vmem:[#allocation8 + $0x40] sm:$0xff]
          %v508 = vld [vmem:[#allocation8 + $0x48] sm:$0xff]
          %v509 = vld [vmem:[#allocation8 + $0x50] sm:$0xff]
          %v510 = vld [vmem:[#allocation8 + $0x58] sm:$0xff]
          %v511 = vld [vmem:[#allocation8 + $0x60] sm:$0xff]
          %v512 = vld [vmem:[#allocation8 + $0x68] sm:$0xff]
          %v513 = vld [vmem:[#allocation8 + $0x70] sm:$0xff]
          %v514 = vld [vmem:[#allocation8 + $0x78] sm:$0xff]
          %v515 = vld [vmem:[#allocation9] sm:$0x1]
          %v517 = vperm.slane %v515, 0
          %519 = vmatpush.msra.mxu0 %v514
          %520 = vmatpush.msra.mxu0 %v513
          %521 = vmatpush.msra.mxu0 %v512
          %522 = vmatpush.msra.mxu0 %v511
          %523 = vmatpush.msra.mxu0 %v510
          %524 = vmatpush.msra.mxu0 %v509
          %525 = vmatpush.msra.mxu0 %v508
          %526 = vmatpush.msra.mxu0 %v507
          %527 = vmatpush.msra.mxu0 %v506
          %528 = vmatpush.msra.mxu0 %v505
          %529 = vmatpush.msra.mxu0 %v504
          %530 = vmatpush.msra.mxu0 %v503
          %531 = vmatpush.msra.mxu0 %v502
          %532 = vmatpush.msra.mxu0 %v501
          %533 = vmatpush.msra.mxu0 %v500
          %534 = vmatpush.msra.mxu0 %v499
          %535 = vmatmul.f32.gmra.mxu0 %v497
          %v536 = vpop.f32.mrf.mxu0
          %v537 = vadd.f32 %v517, %v536
          %538 = vmatmul.f32.gmra.mxu0 %v498
          %v539 = vpop.f32.mrf.mxu0
          %v540 = vadd.f32 %v517, %v539
          %541 = vdwg.mxu0
          %v542 = vmax.f32 %v537, 0.0
          %v543 = vmax.f32 %v540, 0.0
          %v544 = vld [vmem:[#allocation11] sm:$0xff]
          %v545 = vld [vmem:[#allocation11 + $0x8] sm:$0xff]
          %v546 = vld [vmem:[#allocation11 + $0x10] sm:$0xff]
          %v547 = vld [vmem:[#allocation11 + $0x18] sm:$0xff]
          %v548 = vld [vmem:[#allocation11 + $0x20] sm:$0xff]
          %v549 = vld [vmem:[#allocation11 + $0x28] sm:$0xff]
          %v550 = vld [vmem:[#allocation11 + $0x30] sm:$0xff]
          %v551 = vld [vmem:[#allocation11 + $0x38] sm:$0xff]
          %v552 = vld [vmem:[#allocation11 + $0x40] sm:$0xff]
          %v553 = vld [vmem:[#allocation11 + $0x48] sm:$0xff]
          %v554 = vld [vmem:[#allocation11 + $0x50] sm:$0xff]
          %v555 = vld [vmem:[#allocation11 + $0x58] sm:$0xff]
          %v556 = vld [vmem:[#allocation11 + $0x60] sm:$0xff]
          %v557 = vld [vmem:[#allocation11 + $0x68] sm:$0xff]
          %v558 = vld [vmem:[#allocation11 + $0x70] sm:$0xff]
          %v559 = vld [vmem:[#allocation11 + $0x78] sm:$0xff]
          %v560 = vld [vmem:[#allocation11 + $0x80] sm:$0xff]
          %v561 = vld [vmem:[#allocation11 + $0x88] sm:$0xff]
          %v562 = vld [vmem:[#allocation11 + $0x90] sm:$0xff]
          %v563 = vld [vmem:[#allocation11 + $0x98] sm:$0xff]
          %v564 = vld [vmem:[#allocation11 + $0xa0] sm:$0xff]
          %v565 = vld [vmem:[#allocation11 + $0xa8] sm:$0xff]
          %v566 = vld [vmem:[#allocation11 + $0xb0] sm:$0xff]
          %v567 = vld [vmem:[#allocation11 + $0xb8] sm:$0xff]
          %v568 = vld [vmem:[#allocation11 + $0xc0] sm:$0xff]
          %v569 = vld [vmem:[#allocation11 + $0xc8] sm:$0xff]
          %v570 = vld [vmem:[#allocation11 + $0xd0] sm:$0xff]
          %v571 = vld [vmem:[#allocation11 + $0xd8] sm:$0xff]
          %v572 = vld [vmem:[#allocation11 + $0xe0] sm:$0xff]
          %v573 = vld [vmem:[#allocation11 + $0xe8] sm:$0xff]
          %v574 = vld [vmem:[#allocation11 + $0xf0] sm:$0xff]
          %v575 = vld [vmem:[#allocation11 + $0xf8] sm:$0xff]
          %v576 = vld [vmem:[%s6] sm:$0x3]
          %v578 = vperm.slane %v576, 0
          %v579 = vperm.slane %v576, 1
          %582 = vmatpush.msra.mxu0 %v574
          %583 = vmatpush.msra.mxu0 %v572
          %584 = vmatpush.msra.mxu0 %v570
          %585 = vmatpush.msra.mxu0 %v568
          %586 = vmatpush.msra.mxu0 %v566
          %587 = vmatpush.msra.mxu0 %v564
          %588 = vmatpush.msra.mxu0 %v562
          %589 = vmatpush.msra.mxu0 %v560
          %590 = vmatpush.msra.mxu0 %v558
          %591 = vmatpush.msra.mxu0 %v556
          %592 = vmatpush.msra.mxu0 %v554
          %593 = vmatpush.msra.mxu0 %v552
          %594 = vmatpush.msra.mxu0 %v550
          %595 = vmatpush.msra.mxu0 %v548
          %596 = vmatpush.msra.mxu0 %v546
          %597 = vmatpush.msra.mxu0 %v544
          %598 = vmatmul.f32.gmra.mxu0 %v542
          %v599 = vpop.f32.mrf.mxu0
          %v600 = vadd.f32 %v578, %v599
          %601 = vmatmul.f32.gmra.mxu0 %v543
          %v602 = vpop.f32.mrf.mxu0
          %v603 = vadd.f32 %v578, %v602
          %604 = vdwg.mxu0
          %605 = vmatpush.msra.mxu0 %v575
          %606 = vmatpush.msra.mxu0 %v573
          %607 = vmatpush.msra.mxu0 %v571
          %608 = vmatpush.msra.mxu0 %v569
          %609 = vmatpush.msra.mxu0 %v567
          %610 = vmatpush.msra.mxu0 %v565
          %611 = vmatpush.msra.mxu0 %v563
          %612 = vmatpush.msra.mxu0 %v561
          %613 = vmatpush.msra.mxu0 %v559
          %614 = vmatpush.msra.mxu0 %v557
          %615 = vmatpush.msra.mxu0 %v555
          %616 = vmatpush.msra.mxu0 %v553
          %617 = vmatpush.msra.mxu0 %v551
          %618 = vmatpush.msra.mxu0 %v549
          %619 = vmatpush.msra.mxu0 %v547
          %620 = vmatpush.msra.mxu0 %v545
          %621 = vmatmul.f32.gmra.mxu0 %v542
          %v622 = vpop.f32.mrf.mxu0
          %v623 = vadd.f32 %v579, %v622
          %624 = vmatmul.f32.gmra.mxu0 %v543
          %v625 = vpop.f32.mrf.mxu0
          %v626 = vadd.f32 %v579, %v625
          %627 = vdwg.mxu0
          %628 = vst [vmem:[%s387] sm:$0xff] %v600
          %629 = vst [vmem:[%s387 + $0x8] sm:$0xff] %v623
          %630 = vst [vmem:[%s387 + $0x10] sm:$0xff] %v603
          %631 = vst [vmem:[%s387 + $0x18] sm:$0xff] %v626
        $region76: #{tpu_custom_call.1} parent=47 // pred_fallthru
          _
        %s632 = sand.u32 %s205, 1
        %s633 = scalar_lea.sflag [#allocation5], %s632
        %s634 = sand.u32 %s205, 1
        %s635 = smul.addr %s634, 32
        %s636 = scalar_lea.vmem [#allocation12], %s635
        // Predicated region
        $region77: #{tpu_custom_call.1} parent=47 // pred_check
          %p637 = pneg %p215
        $region78: #{tpu_custom_call.1} parent=47 // pred_check_branch
          %639 = sbr.rel (%p637) target = $region80
        $region79: #{tpu_custom_call.1} parent=47 // pred_region
          %s640 = smul.u32 2, %s30
          %642 = vsyncadd %s633, 0
          %s643 = smul.addr %s640, 2
          %s644 = smul.addr %s643, 8
          %s645 = scalar_lea.hbm %s7, %s644
          %s646 = sshll.u32 %s636, 4
          %s647 = int_to_ptr.vmem [resolvable:$true] %s646
          %s648 = sshll.u32 %s645, 4
          %s649 = int_to_ptr.hbm [resolvable:$true] %s648
          %654 = dma.vmem_to_hbm [thread:$0]  %s647, 512, %s649, %s633, 256, 256, 16
        $region80: #{tpu_custom_call.1} parent=47 // pred_fallthru
          _
      $region48: #{tpu_custom_call.1} parent=5 // pred_fallthru
        _
      %p655 = scmp.le.s32.totalorder 2, %s21
      // Predicated region
      $region81: #{tpu_custom_call.1} parent=5 // pred_check
        %p656 = pneg %p655
      $region82: #{tpu_custom_call.1} parent=5 // pred_check_branch
        %658 = sbr.rel (%p656) target = $region84
      $region83: #{tpu_custom_call.1} parent=5 // pred_region
        %s659 = ssub.s32 %s21, 2
        // Predicated region
        $region85: #{tpu_custom_call.1} parent=83 // pred_check
          %p660 = pneg %p221
        $region86: #{tpu_custom_call.1} parent=83 // pred_check_branch
          %662 = sbr.rel (%p660) target = $region88
        $region87: #{tpu_custom_call.1} parent=83 // pred_region
          %s663 = sand.u32 %s206, 1
          %s664 = scalar_lea.sflag [#allocation5], %s663
          %s665 = sand.u32 %s206, 1
          %s666 = smul.addr %s665, 32
          %s667 = scalar_lea.vmem [#allocation12], %s666
          %669 = dma.done %s664, 512
        $region88: #{tpu_custom_call.1} parent=83 // pred_fallthru
          _
      $region84: #{tpu_custom_call.1} parent=5 // pred_fallthru
        _
    $region6: #{tpu_custom_call.1} parent=1 // loop_footer
      %s25 = sadd.s32 1, %s21
    $region7: #{tpu_custom_call.1} parent=1 // loop_footer_branch
      %20 = sbr.rel target = $region3
    $region8: #{tpu_custom_call.1} parent=1 // loop_exit
      _
    %670 = vsyncpa [#allocation4], 1
    %s671 = scalar_lea.sflag [#allocation4], 1
    %672 = vsyncpa %s671, 1
    %673 = vsyncpa [#allocation7], 1
    %674 = vsyncpa [#allocation10], 1
    %675 = vsyncpa [#allocation5], 1
    %s676 = scalar_lea.sflag [#allocation5], 1
    %677 = vsyncpa %s676, 1

</llo_original>
